<compile_context>
chip_gen: v6e
topology: v6e:2x2x1
jax: 0.10.0
libtpu: 0.0.40
codegen_flags: <defaults>
</compile_context>

<pallas_src>
import functools

import jax
import jax.numpy as jnp
import numpy as np
from jax.experimental import pallas as pl
from jax.experimental.pallas import tpu as pltpu

CONTEXT_SIZE = 64
LAYER_SIZE = 256
LN_EPS = 1e-3          # matches nn.LayerNorm(layer_size, eps=0.001)
EPSILON = 1e-12


# ---------------------------------------------------------------------------
# in-kernel math helpers
# ---------------------------------------------------------------------------
def _silu(x, *, approx):
    # x * sigmoid(x); exp runs on the EUP. Hidden layers use the approximate
    # EUP reciprocal; the output head uses the exact divide for accuracy.
    s = 1.0 + jnp.exp(-x)
    if approx:
        return x * pl.reciprocal(s, approx=True)
    return x / s


def _layernorm(x, gamma, beta, eps):
    # PyTorch LayerNorm: biased variance over the last dim.
    mu = jnp.mean(x, axis=-1, keepdims=True)
    xc = x - mu
    var = jnp.mean(xc * xc, axis=-1, keepdims=True)
    return xc * jax.lax.rsqrt(var + eps) * gamma + beta


# ---------------------------------------------------------------------------
# kernel
# ---------------------------------------------------------------------------
def _forward_kernel(obs_ref, act_ref, ctx_ref,
                    w0_ref, g0_ref, b0_ref,
                    w1_ref, g1_ref, b1_ref,
                    w2_ref,
                    out_ref,
                    xcat_ref,
                    *, obs_size, act_size, ctx_size, k0):
    bf = jnp.bfloat16
    f32 = jnp.float32
    cat = obs_size + act_size + ctx_size

    # Fused concat: lane-masked copies of obs/act/ctx into the (tb, k0) scratch.
    xcat_ref[:, 0:obs_size] = obs_ref[...].astype(f32)
    xcat_ref[:, obs_size:obs_size + act_size] = act_ref[...].astype(f32)
    xcat_ref[:, obs_size + act_size:cat] = ctx_ref[...].astype(f32)
    if k0 > cat:
        # Zero tail (W0's padded rows are zero too; keep the scratch clean so
        # no stale NaNs can leak through 0 * NaN).
        xcat_ref[:, cat:k0] = jnp.zeros((xcat_ref.shape[0], k0 - cat), f32)

    # Layer 0: a single K=k0 dot against the zero-padded bf16 W0.
    h = jnp.dot(xcat_ref[...].astype(bf), w0_ref[...],
                preferred_element_type=f32)
    h = _silu(_layernorm(h, g0_ref[...], b0_ref[...], LN_EPS), approx=True)

    # Layer 1: K=256, N=256 -> exactly one 256x256 MXU weight tile on v6e/v7x.
    h = jnp.dot(h.astype(bf), w1_ref[...], preferred_element_type=f32)
    h = _silu(_layernorm(h, g1_ref[...], b1_ref[...], LN_EPS), approx=True)

    # Output head: one dot producing the full (tb, 2*obs) block (mean|var).
    y = _silu(jnp.dot(h.astype(bf), w2_ref[...], preferred_element_type=f32),
              approx=False) + EPSILON
    out_ref[...] = y.astype(out_ref.dtype)


# ---------------------------------------------------------------------------
# wrapper
# ---------------------------------------------------------------------------
def _round_up(x, m):
    return ((x + m - 1) // m) * m


def forward_model(obs, action, context, params, *, tile_b=1024):
    """Pallas implementation of ForwardModel.forward."""
    B, obs_size = obs.shape
    act_size = action.shape[-1]
    ctx_size = context.shape[-1]
    w0, g0, b0, w1, g1, b1, w2 = params
    layer = w0.shape[1]

    cat = obs_size + act_size + ctx_size
    k0 = _round_up(cat, 128)

    # Weight prep: bf16 for the MXU; W0 zero-padded along its input dim so the
    # in-kernel concat tile can be a dense k0-lane block. LN params stay f32.
    bf = jnp.bfloat16
    w0b = w0.astype(bf)
    if k0 > cat:
        w0b = jnp.pad(w0b, ((0, k0 - cat), (0, 0)))
    w1b = w1.astype(bf)
    w2b = w2.astype(bf)
    g0 = g0.reshape(1, layer)
    b0 = b0.reshape(1, layer)
    g1 = g1.reshape(1, layer)
    b1 = b1.reshape(1, layer)

    # Batch tiling: pad only to a multiple of 8, then pick ~equal tiles of up
    # to tile_b rows. Force >= 2 grid steps when the batch allows so both v7x
    # TensorCores get work; total padding waste stays < 8 * grid rows.
    padded8 = _round_up(max(B, 1), 8)
    steps = -(-padded8 // max(tile_b, 8))
    if padded8 >= 16:
        steps = max(steps, 2)
    tb = _round_up(-(-padded8 // steps), 8)
    grid_steps = -(-padded8 // tb)
    padded_b = tb * grid_steps

    def pad_rows(a):
        if a.shape[0] == padded_b:
            return a
        return jnp.pad(a, ((0, padded_b - a.shape[0]), (0, 0)))

    obs_p = pad_rows(obs)
    act_p = pad_rows(action)
    ctx_p = pad_rows(context)

    row = lambda i: (i, 0)
    rep = lambda i: (0, 0)     # constant block index: weights stay VMEM-resident

    kernel = functools.partial(_forward_kernel, obs_size=obs_size,
                               act_size=act_size, ctx_size=ctx_size, k0=k0)

    out = pl.pallas_call(
        kernel,
        out_shape=jax.ShapeDtypeStruct((padded_b, 2 * obs_size), obs.dtype),
        grid_spec=pltpu.PrefetchScalarGridSpec(
            num_scalar_prefetch=0,
            grid=(grid_steps,),
            in_specs=[
                pl.BlockSpec((tb, obs_size), row),          # obs tile
                pl.BlockSpec((tb, act_size), row),          # action tile
                pl.BlockSpec((tb, ctx_size), row),          # context tile
                pl.BlockSpec((k0, layer), rep),             # W0 (padded, fused concat)
                pl.BlockSpec((1, layer), rep),              # ln0 gamma
                pl.BlockSpec((1, layer), rep),              # ln0 beta
                pl.BlockSpec((layer, layer), rep),          # W1
                pl.BlockSpec((1, layer), rep),              # ln1 gamma
                pl.BlockSpec((1, layer), rep),              # ln1 beta
                pl.BlockSpec((layer, 2 * obs_size), rep),   # W2 (mean|var merged)
            ],
            out_specs=pl.BlockSpec((tb, 2 * obs_size), row),
            scratch_shapes=[pltpu.VMEM((tb, k0), jnp.float32)],
        ),
        compiler_params=pltpu.CompilerParams(
            dimension_semantics=("parallel",),
            vmem_limit_bytes=(64 * 1024 * 1024 if tb >= 2048 else None)),
    )(obs_p, act_p, ctx_p, w0b, g0, b0, w1b, g1, b1, w2b)

    return {"mean": out[:B, :obs_size], "var": out[:B, obs_size:]}


# ---------------------------------------------------------------------------
# synthetic params + pure-JAX reference
# ---------------------------------------------------------------------------
def init_params(key, obs_size, act_size):
    """Deterministic synthetic parameter init (shapes from ForwardModel.__init__)."""
    din = obs_size + act_size + CONTEXT_SIZE
    k0, k1, k2, k3, k4, k5, k6 = jax.random.split(key, 7)
    w0 = jax.random.normal(k0, (din, LAYER_SIZE), jnp.float32) * 0.05
    w1 = jax.random.normal(k1, (LAYER_SIZE, LAYER_SIZE), jnp.float32) * 0.05
    w2 = jax.random.normal(k2, (LAYER_SIZE, 2 * obs_size), jnp.float32) * 0.05
    g0 = 1.0 + 0.1 * jax.random.normal(k3, (1, LAYER_SIZE), jnp.float32)
    b0 = 0.1 * jax.random.normal(k4, (1, LAYER_SIZE), jnp.float32)
    g1 = 1.0 + 0.1 * jax.random.normal(k5, (1, LAYER_SIZE), jnp.float32)
    b1 = 0.1 * jax.random.normal(k6, (1, LAYER_SIZE), jnp.float32)
    return (w0, g0, b0, w1, g1, b1, w2)


def forward_model_ref(obs, action, context, params):
    """Pure-JAX f32 reference for correctness checking."""
    w0, g0, b0, w1, g1, b1, w2 = params

    def silu(v):
        return v * jax.nn.sigmoid(v)

    def ln(v, g, b):
        mu = jnp.mean(v, axis=-1, keepdims=True)
        xc = v - mu
        var = jnp.mean(xc * xc, axis=-1, keepdims=True)
        return xc * jax.lax.rsqrt(var + LN_EPS) * g + b

    x = jnp.concatenate([obs, action, context], axis=-1)
    h = silu(ln(x @ w0, g0, b0))
    h = silu(ln(h @ w1, g1, b1))
    h = silu(h @ w2) + EPSILON
    obs_size = obs.shape[-1]
    return {"mean": h[:, :obs_size], "var": h[:, obs_size:]}


if __name__ == "__main__":
    key = jax.random.PRNGKey(0)
    k_obs, k_act, k_ctx, k_par = jax.random.split(key, 4)

    obs_size, act_size = 16, 4
    params = init_params(k_par, obs_size, act_size)

    def check(B):
        o = jax.random.normal(k_obs, (B, obs_size), jnp.float32)
        a = jax.random.normal(k_act, (B, act_size), jnp.float32)
        c = jax.random.normal(k_ctx, (B, CONTEXT_SIZE), jnp.float32)
        out = forward_model(o, a, c, params)
        jax.block_until_ready(out)
        ref = forward_model_ref(o, a, c, params)
        # bf16 MXU inputs (f32 accumulation) -> loosened tolerance vs f32 ref.
        assert np.allclose(np.asarray(out["mean"]), np.asarray(ref["mean"]),
                           atol=2e-2, rtol=2e-2)
        assert np.allclose(np.asarray(out["var"]), np.asarray(ref["var"]),
                           atol=2e-2, rtol=2e-2)

    check(12)   # B not a multiple of 8 -> exercises padding + 2-step grid
    check(40)   # exercises balanced-tile selection (tb=24, grid=2)

    print("KERNEL_OK")
</pallas_src>

<mosaic_0001>
module attributes {stable_mosaic.version = 11 : i64} {
  func.func @_forward_kernel(%arg0: i32, %arg1: memref<8x16xf32, #tpu.memory_space<vmem>>, %arg2: memref<8x4xf32, #tpu.memory_space<vmem>>, %arg3: memref<8x64xf32, #tpu.memory_space<vmem>>, %arg4: memref<128x256xbf16, #tpu.memory_space<vmem>>, %arg5: memref<1x256xf32, #tpu.memory_space<vmem>>, %arg6: memref<1x256xf32, #tpu.memory_space<vmem>>, %arg7: memref<256x256xbf16, #tpu.memory_space<vmem>>, %arg8: memref<1x256xf32, #tpu.memory_space<vmem>>, %arg9: memref<1x256xf32, #tpu.memory_space<vmem>>, %arg10: memref<256x32xbf16, #tpu.memory_space<vmem>>, %arg11: memref<8x32xf32, #tpu.memory_space<vmem>>, %arg12: memref<8x128xf32, #tpu.memory_space<vmem>>) attributes {dimension_semantics = [#tpu.dimension_semantics<parallel>], iteration_bounds = array<i64: 2>, scalar_prefetch = 0 : i64, scratch_operands = 1 : i64, tpu.core_type = #tpu.core_type<tc>, window_params = [{transform_indices = @transform_0, window_bounds = array<i64: 8, 16>}, {transform_indices = @transform_1, window_bounds = array<i64: 8, 4>}, {transform_indices = @transform_2, window_bounds = array<i64: 8, 64>}, {pipeline_mode = #tpu.pipeline_mode<synchronous>, transform_indices = @transform_3, window_bounds = array<i64: 128, 256>}, {pipeline_mode = #tpu.pipeline_mode<synchronous>, transform_indices = @transform_4, window_bounds = array<i64: 1, 256>}, {pipeline_mode = #tpu.pipeline_mode<synchronous>, transform_indices = @transform_5, window_bounds = array<i64: 1, 256>}, {pipeline_mode = #tpu.pipeline_mode<synchronous>, transform_indices = @transform_6, window_bounds = array<i64: 256, 256>}, {pipeline_mode = #tpu.pipeline_mode<synchronous>, transform_indices = @transform_7, window_bounds = array<i64: 1, 256>}, {pipeline_mode = #tpu.pipeline_mode<synchronous>, transform_indices = @transform_8, window_bounds = array<i64: 1, 256>}, {pipeline_mode = #tpu.pipeline_mode<synchronous>, transform_indices = @transform_9, window_bounds = array<i64: 256, 32>}, {transform_indices = @transform_10, window_bounds = array<i64: 8, 32>}]} {
    %c0 = arith.constant 0 : index
    %c0_0 = arith.constant 0 : index
    %0 = vector.load %arg1[%c0, %c0_0] : memref<8x16xf32, #tpu.memory_space<vmem>>, vector<8x16xf32>
    %c0_1 = arith.constant 0 : index
    %c0_2 = arith.constant 0 : index
    %1 = vector.load %arg12[%c0_1, %c0_2] : memref<8x128xf32, #tpu.memory_space<vmem>>, vector<8x16xf32>
    tpu.vector_store %arg12[%c0_1, %c0_2], %0 {strides = array<i32>} : memref<8x128xf32, #tpu.memory_space<vmem>>, vector<8x16xf32>,
    %c0_3 = arith.constant 0 : index
    %c0_4 = arith.constant 0 : index
    %2 = vector.load %arg2[%c0_3, %c0_4] : memref<8x4xf32, #tpu.memory_space<vmem>>, vector<8x4xf32>
    %c0_5 = arith.constant 0 : index
    %c16 = arith.constant 16 : index
    %3 = vector.load %arg12[%c0_5, %c16] : memref<8x128xf32, #tpu.memory_space<vmem>>, vector<8x4xf32>
    tpu.vector_store %arg12[%c0_5, %c16], %2 {strides = array<i32>} : memref<8x128xf32, #tpu.memory_space<vmem>>, vector<8x4xf32>,
    %c0_6 = arith.constant 0 : index
    %c0_7 = arith.constant 0 : index
    %4 = vector.load %arg3[%c0_6, %c0_7] : memref<8x64xf32, #tpu.memory_space<vmem>>, vector<8x64xf32>
    %c0_8 = arith.constant 0 : index
    %c20 = arith.constant 20 : index
    %5 = vector.load %arg12[%c0_8, %c20] : memref<8x128xf32, #tpu.memory_space<vmem>>, vector<8x64xf32>
    tpu.vector_store %arg12[%c0_8, %c20], %4 {strides = array<i32>} : memref<8x128xf32, #tpu.memory_space<vmem>>, vector<8x64xf32>,
    %cst = arith.constant 0.000000e+00 : f32
    %6 = vector.broadcast %cst : f32 to vector<8x44xf32>
    %c0_9 = arith.constant 0 : index
    %c84 = arith.constant 84 : index
    %7 = vector.load %arg12[%c0_9, %c84] : memref<8x128xf32, #tpu.memory_space<vmem>>, vector<8x44xf32>
    tpu.vector_store %arg12[%c0_9, %c84], %6 {strides = array<i32>} : memref<8x128xf32, #tpu.memory_space<vmem>>, vector<8x44xf32>,
    %c0_10 = arith.constant 0 : index
    %c0_11 = arith.constant 0 : index
    %8 = vector.load %arg12[%c0_10, %c0_11] : memref<8x128xf32, #tpu.memory_space<vmem>>, vector<8x128xf32>
    %9 = arith.truncf %8 : vector<8x128xf32> to vector<8x128xbf16>
    %c0_12 = arith.constant 0 : index
    %c0_13 = arith.constant 0 : index
    %10 = vector.load %arg4[%c0_12, %c0_13] : memref<128x256xbf16, #tpu.memory_space<vmem>>, vector<128x256xbf16>
    %cst_14 = arith.constant dense<0.000000e+00> : vector<8x256xf32>
    %11 = tpu.matmul %9, %10, %cst_14 {dimension_numbers = #tpu.dot_dimension_numbers<[1], [0], [0], [1], [0, 0, 1, 1], [], []>} : vector<8x128xbf16>, vector<128x256xbf16>, vector<8x256xf32> -> vector<8x256xf32>
    %c0_15 = arith.constant 0 : index
    %c0_16 = arith.constant 0 : index
    %12 = vector.load %arg5[%c0_15, %c0_16] : memref<1x256xf32, #tpu.memory_space<vmem>>, vector<1x256xf32>
    %c0_17 = arith.constant 0 : index
    %c0_18 = arith.constant 0 : index
    %13 = vector.load %arg6[%c0_17, %c0_18] : memref<1x256xf32, #tpu.memory_space<vmem>>, vector<1x256xf32>
    %cst_19 = arith.constant dense<0.000000e+00> : vector<8xf32>
    %14 = vector.multi_reduction <add>, %11, %cst_19 [1] : vector<8x256xf32> to vector<8xf32>
    %15 = vector.shape_cast %14 : vector<8xf32> to vector<8x1xf32>
    %cst_20 = arith.constant 2.560000e+02 : f32
    %16 = vector.broadcast %cst_20 : f32 to vector<8x1xf32>
    %17 = arith.divf %15, %16 : vector<8x1xf32>
    %18 = vector.broadcast %17 : vector<8x1xf32> to vector<8x256xf32>
    %19 = arith.subf %11, %18 : vector<8x256xf32>
    %20 = arith.mulf %19, %19 : vector<8x256xf32>
    %cst_21 = arith.constant dense<0.000000e+00> : vector<8xf32>
    %21 = vector.multi_reduction <add>, %20, %cst_21 [1] : vector<8x256xf32> to vector<8xf32>
    %22 = vector.shape_cast %21 : vector<8xf32> to vector<8x1xf32>
    %cst_22 = arith.constant 2.560000e+02 : f32
    %23 = vector.broadcast %cst_22 : f32 to vector<8x1xf32>
    %24 = arith.divf %22, %23 : vector<8x1xf32>
    %cst_23 = arith.constant 1.000000e-03 : f32
    %25 = vector.broadcast %cst_23 : f32 to vector<8x1xf32>
    %26 = arith.addf %24, %25 : vector<8x1xf32>
    %27 = math.rsqrt %26 : vector<8x1xf32>
    %28 = vector.broadcast %27 : vector<8x1xf32> to vector<8x256xf32>
    %29 = arith.mulf %19, %28 : vector<8x256xf32>
    %30 = vector.broadcast %12 : vector<1x256xf32> to vector<8x256xf32>
    %31 = arith.mulf %29, %30 : vector<8x256xf32>
    %32 = vector.broadcast %13 : vector<1x256xf32> to vector<8x256xf32>
    %33 = arith.addf %31, %32 : vector<8x256xf32>
    %cst_24 = arith.constant 0.000000e+00 : f32
    %34 = vector.broadcast %cst_24 : f32 to vector<8x256xf32>
    %35 = arith.subf %34, %33 : vector<8x256xf32>
    %36 = math.exp %35 : vector<8x256xf32>
    %cst_25 = arith.constant 1.000000e+00 : f32
    %37 = vector.broadcast %cst_25 : f32 to vector<8x256xf32>
    %38 = arith.addf %37, %36 : vector<8x256xf32>
    %39 = tpu.reciprocal %38 {approx = true} : vector<8x256xf32> -> vector<8x256xf32>
    %40 = arith.mulf %33, %39 : vector<8x256xf32>
    %41 = arith.truncf %40 : vector<8x256xf32> to vector<8x256xbf16>
    %c0_26 = arith.constant 0 : index
    %c0_27 = arith.constant 0 : index
    %42 = vector.load %arg7[%c0_26, %c0_27] : memref<256x256xbf16, #tpu.memory_space<vmem>>, vector<256x256xbf16>
    %cst_28 = arith.constant dense<0.000000e+00> : vector<8x256xf32>
    %43 = tpu.matmul %41, %42, %cst_28 {dimension_numbers = #tpu.dot_dimension_numbers<[1], [0], [0], [1], [0, 0, 1, 1], [], []>} : vector<8x256xbf16>, vector<256x256xbf16>, vector<8x256xf32> -> vector<8x256xf32>
    %c0_29 = arith.constant 0 : index
    %c0_30 = arith.constant 0 : index
    %44 = vector.load %arg8[%c0_29, %c0_30] : memref<1x256xf32, #tpu.memory_space<vmem>>, vector<1x256xf32>
    %c0_31 = arith.constant 0 : index
    %c0_32 = arith.constant 0 : index
    %45 = vector.load %arg9[%c0_31, %c0_32] : memref<1x256xf32, #tpu.memory_space<vmem>>, vector<1x256xf32>
    %cst_33 = arith.constant dense<0.000000e+00> : vector<8xf32>
    %46 = vector.multi_reduction <add>, %43, %cst_33 [1] : vector<8x256xf32> to vector<8xf32>
    %47 = vector.shape_cast %46 : vector<8xf32> to vector<8x1xf32>
    %cst_34 = arith.constant 2.560000e+02 : f32
    %48 = vector.broadcast %cst_34 : f32 to vector<8x1xf32>
    %49 = arith.divf %47, %48 : vector<8x1xf32>
    %50 = vector.broadcast %49 : vector<8x1xf32> to vector<8x256xf32>
    %51 = arith.subf %43, %50 : vector<8x256xf32>
    %52 = arith.mulf %51, %51 : vector<8x256xf32>
    %cst_35 = arith.constant dense<0.000000e+00> : vector<8xf32>
    %53 = vector.multi_reduction <add>, %52, %cst_35 [1] : vector<8x256xf32> to vector<8xf32>
    %54 = vector.shape_cast %53 : vector<8xf32> to vector<8x1xf32>
    %cst_36 = arith.constant 2.560000e+02 : f32
    %55 = vector.broadcast %cst_36 : f32 to vector<8x1xf32>
    %56 = arith.divf %54, %55 : vector<8x1xf32>
    %cst_37 = arith.constant 1.000000e-03 : f32
    %57 = vector.broadcast %cst_37 : f32 to vector<8x1xf32>
    %58 = arith.addf %56, %57 : vector<8x1xf32>
    %59 = math.rsqrt %58 : vector<8x1xf32>
    %60 = vector.broadcast %59 : vector<8x1xf32> to vector<8x256xf32>
    %61 = arith.mulf %51, %60 : vector<8x256xf32>
    %62 = vector.broadcast %44 : vector<1x256xf32> to vector<8x256xf32>
    %63 = arith.mulf %61, %62 : vector<8x256xf32>
    %64 = vector.broadcast %45 : vector<1x256xf32> to vector<8x256xf32>
    %65 = arith.addf %63, %64 : vector<8x256xf32>
    %cst_38 = arith.constant 0.000000e+00 : f32
    %66 = vector.broadcast %cst_38 : f32 to vector<8x256xf32>
    %67 = arith.subf %66, %65 : vector<8x256xf32>
    %68 = math.exp %67 : vector<8x256xf32>
    %cst_39 = arith.constant 1.000000e+00 : f32
    %69 = vector.broadcast %cst_39 : f32 to vector<8x256xf32>
    %70 = arith.addf %69, %68 : vector<8x256xf32>
    %71 = tpu.reciprocal %70 {approx = true} : vector<8x256xf32> -> vector<8x256xf32>
    %72 = arith.mulf %65, %71 : vector<8x256xf32>
    %73 = arith.truncf %72 : vector<8x256xf32> to vector<8x256xbf16>
    %c0_40 = arith.constant 0 : index
    %c0_41 = arith.constant 0 : index
    %74 = vector.load %arg10[%c0_40, %c0_41] : memref<256x32xbf16, #tpu.memory_space<vmem>>, vector<256x32xbf16>
    %cst_42 = arith.constant dense<0.000000e+00> : vector<8x32xf32>
    %75 = tpu.matmul %73, %74, %cst_42 {dimension_numbers = #tpu.dot_dimension_numbers<[1], [0], [0], [1], [0, 0, 1, 1], [], []>} : vector<8x256xbf16>, vector<256x32xbf16>, vector<8x32xf32> -> vector<8x32xf32>
    %cst_43 = arith.constant 0.000000e+00 : f32
    %76 = vector.broadcast %cst_43 : f32 to vector<8x32xf32>
    %77 = arith.subf %76, %75 : vector<8x32xf32>
    %78 = math.exp %77 : vector<8x32xf32>
    %cst_44 = arith.constant 1.000000e+00 : f32
    %79 = vector.broadcast %cst_44 : f32 to vector<8x32xf32>
    %80 = arith.addf %79, %78 : vector<8x32xf32>
    %81 = arith.divf %75, %80 : vector<8x32xf32>
    %cst_45 = arith.constant 9.99999996E-13 : f32
    %82 = vector.broadcast %cst_45 : f32 to vector<8x32xf32>
    %83 = arith.addf %81, %82 : vector<8x32xf32>
    %c0_46 = arith.constant 0 : index
    %c0_47 = arith.constant 0 : index
    %84 = vector.load %arg11[%c0_46, %c0_47] : memref<8x32xf32, #tpu.memory_space<vmem>>, vector<8x32xf32>
    tpu.vector_store %arg11[%c0_46, %c0_47], %83 {strides = array<i32>} : memref<8x32xf32, #tpu.memory_space<vmem>>, vector<8x32xf32>,
    return
  }
  func.func @transform_0(%arg0: i32) -> (i32, i32) {
    %c0_i32 = arith.constant 0 : i32
    %c0_i32_0 = arith.constant 0 : i32
    return %arg0, %c0_i32 : i32, i32
  }
  func.func @transform_1(%arg0: i32) -> (i32, i32) {
    %c0_i32 = arith.constant 0 : i32
    %c0_i32_0 = arith.constant 0 : i32
    return %arg0, %c0_i32 : i32, i32
  }
  func.func @transform_2(%arg0: i32) -> (i32, i32) {
    %c0_i32 = arith.constant 0 : i32
    %c0_i32_0 = arith.constant 0 : i32
    return %arg0, %c0_i32 : i32, i32
  }
  func.func @transform_3(%arg0: i32) -> (i32, i32) {
    %c0_i32 = arith.constant 0 : i32
    %c0_i32_0 = arith.constant 0 : i32
    %c0_i32_1 = arith.constant 0 : i32
    return %c0_i32, %c0_i32_0 : i32, i32
  }
  func.func @transform_4(%arg0: i32) -> (i32, i32) {
    %c0_i32 = arith.constant 0 : i32
    %c0_i32_0 = arith.constant 0 : i32
    %c0_i32_1 = arith.constant 0 : i32
    return %c0_i32, %c0_i32_0 : i32, i32
  }
  func.func @transform_5(%arg0: i32) -> (i32, i32) {
    %c0_i32 = arith.constant 0 : i32
    %c0_i32_0 = arith.constant 0 : i32
    %c0_i32_1 = arith.constant 0 : i32
    return %c0_i32, %c0_i32_0 : i32, i32
  }
  func.func @transform_6(%arg0: i32) -> (i32, i32) {
    %c0_i32 = arith.constant 0 : i32
    %c0_i32_0 = arith.constant 0 : i32
    %c0_i32_1 = arith.constant 0 : i32
    return %c0_i32, %c0_i32_0 : i32, i32
  }
  func.func @transform_7(%arg0: i32) -> (i32, i32) {
    %c0_i32 = arith.constant 0 : i32
    %c0_i32_0 = arith.constant 0 : i32
    %c0_i32_1 = arith.constant 0 : i32
    return %c0_i32, %c0_i32_0 : i32, i32
  }
  func.func @transform_8(%arg0: i32) -> (i32, i32) {
    %c0_i32 = arith.constant 0 : i32
    %c0_i32_0 = arith.constant 0 : i32
    %c0_i32_1 = arith.constant 0 : i32
    return %c0_i32, %c0_i32_0 : i32, i32
  }
  func.func @transform_9(%arg0: i32) -> (i32, i32) {
    %c0_i32 = arith.constant 0 : i32
    %c0_i32_0 = arith.constant 0 : i32
    %c0_i32_1 = arith.constant 0 : i32
    return %c0_i32, %c0_i32_0 : i32, i32
  }
  func.func @transform_10(%arg0: i32) -> (i32, i32) {
    %c0_i32 = arith.constant 0 : i32
    %c0_i32_0 = arith.constant 0 : i32
    return %arg0, %c0_i32 : i32, i32
  }
}

</mosaic_0001>

<llo_original>
// kernel: tpu_custom_call.1
$region0: #{tpu_custom_call.1}
  #allocation0 [shape = 'u32[]', space=smem, size = 0x4, offset = 0x4, fixed_abs, tag = 'smem constant byte address 0x4 - core index']
  #allocation1 [shape = 'u32[144,128]{1,0:T(1,128)}', space=vmem, size = 0x12000, scoped, tag = 'internal scratch']
  #allocation2 [shape = 'f32[8,128]{1,0:T(8,128)}', space=vmem, size = 0x1000, scoped, tag = 'scratch operand']
  %s0 = inlined_call_operand.vmem [shape: f32[16,16], index: 0, kind: input, shape index: {}]
  %s1 = inlined_call_operand.vmem [shape: f32[16,4], index: 1, kind: input, shape index: {}]
  %s2 = inlined_call_operand.vmem [shape: f32[16,64], index: 2, kind: input, shape index: {}]
  %s3 = inlined_call_operand.vmem [shape: bf16[128,256], index: 3, kind: input, shape index: {}]
  %s4 = inlined_call_operand.vmem [shape: f32[1,256], index: 4, kind: input, shape index: {}]
  %s5 = inlined_call_operand.vmem [shape: f32[1,256], index: 5, kind: input, shape index: {}]
  %s6 = inlined_call_operand.hbm [shape: bf16[256,256], index: 6, kind: input, shape index: {}]
  %s7 = inlined_call_operand.hbm [shape: f32[1,256], index: 7, kind: input, shape index: {}]
  %s8 = inlined_call_operand.hbm [shape: f32[1,256], index: 8, kind: input, shape index: {}]
  %s9 = inlined_call_operand.vmem [shape: bf16[256,32], index: 9, kind: input, shape index: {}]
  %s10 = inlined_call_operand.hbm [shape: f32[16,32], index: 10, kind: output, shape index: {}]
  %s11 = sld [smem:[#allocation0]]
  $region85: #{tpu_custom_call.1} parent=0
    _
  %s13 = ssub.s32 1, %s11
  %s14 = scalar_select 0, %s13, %s11
  $region1: #{tpu_custom_call.1} parent=0
    #allocation3 [shape = 'u8[131072]{0}', space=vmem, size = 0x20000, scoped, tag = 'input window, operand 6, single buffered']
    #allocation4 [shape = 's32[2]{0}', space=sflag, size = 0x8, scoped, tag = 'scoped memory for tpu_custom_call.1']
    #allocation5 [shape = 's32[2]{0}', space=sflag, size = 0x8, scoped, tag = 'scoped memory for tpu_custom_call.1']
    #allocation6 [shape = 'u8[1024]{0}', space=vmem, size = 0x400, scoped, tag = 'input window, operand 7, single buffered']
    #allocation7 [shape = 's32[1]{0}', space=sflag, size = 0x4, scoped, tag = 'scoped memory for tpu_custom_call.1']
    #allocation8 [shape = 'u8[1024]{0}', space=vmem, size = 0x400, scoped, tag = 'input window, operand 8, single buffered']
    #allocation9 [shape = 'u8[8192]{0}', space=vmem, size = 0x2000, scoped, tag = 'output window, operand 0']
    %15 = vsyncpa [#allocation4], 0
    %16 = vsyncpa [#allocation7], 0
    %17 = vsyncpa [#allocation5], 0
    %s18 = scalar_lea.sflag [#allocation5], 1
    %19 = vsyncpa %s18, 0
    loop: start=0, step=1, limit=4
    $region2: #{tpu_custom_call.1} parent=1 // loop_pre_header
      _
    $region3: #{tpu_custom_call.1} parent=1 // loop_header
      %s21 = sphi 0, %s25
      %p22 = scmp.ge.s32.totalorder %s21, 4
      %s31 = sphi 0, %s33
      %s34 = sphi 0, %s31
      %s35 = sphi 0, %s34
      %s51 = sphi 0, %s35
      %s57 = sphi 0, %s59
      %s60 = sphi 0, %s57
      %s61 = sphi 0, %s60
      %s77 = sphi 0, %s61
      %s83 = sphi 0, %s85
      %s86 = sphi 0, %s83
      %s87 = sphi 0, %s86
      %s103 = sphi 0, %s87
      %s107 = sphi 0, %s107
      %s109 = sphi 0, %s107
      %s110 = sphi 0, %s109
      %s124 = sphi 0, %s110
      %s128 = sphi 0, %s128
      %s130 = sphi 0, %s128
      %s131 = sphi 0, %s130
      %s145 = sphi 0, %s131
      %s149 = sphi 0, %s149
      %s151 = sphi 0, %s149
      %s152 = sphi 0, %s151
      %s166 = sphi 0, %s152
      %s170 = sphi 0, %s170
      %s172 = sphi 0, %s170
      %s173 = sphi 0, %s172
      %s187 = sphi 0, %s173
      %s191 = sphi 0, %s191
      %s193 = sphi 0, %s191
      %s194 = sphi 0, %s193
      %s208 = sphi 0, %s194
      %s212 = sphi 0, %s212
      %s214 = sphi 0, %s212
      %s215 = sphi 0, %s214
      %s229 = sphi 0, %s215
      %s233 = sphi 0, %s233
      %s235 = sphi 0, %s233
      %s236 = sphi 0, %s235
      %s250 = sphi 0, %s236
      %s256 = sphi 0, %s258
      %s259 = sphi 0, %s256
      %s260 = sphi 0, %s259
      %s276 = sphi 0, %s260
    $region4: #{tpu_custom_call.1} parent=1 // loop_header_branch
      %24 = sbr.rel (%p22) target = $region8
    $region5: #{tpu_custom_call.1} parent=1 // loop_body
      %s26 = ssub.s32 %s21, 1
      %s27 = ssub.s32 %s21, 2
      %s28 = sadd.s32 %s21, 1
      %s29 = ssub.s32 %s21, %s28
      %p30 = scmp.eq.s32.totalorder %s29, 0
      %s32 = sadd.s32 %s31, 1
      %s33 = scalar_select %p30, %s31, %s32
      %p36 = pneg %p30
      %p37 = scmp.eq.s32.totalorder %s21, 1
      %p38 = por %p36, %p37
      %p39 = scmp.ne.s32.totalorder %s31, %s34
      %p40 = scmp.eq.s32.totalorder %s21, 0
      %p41 = por %p39, %p40
      %p42 = scmp.ne.s32.totalorder %s31, %s34
      %p43 = scmp.eq.s32.totalorder %s26, 1
      %p44 = por %p42, %p43
      %p45 = scmp.ne.s32.totalorder %s34, %s35
      %p46 = scmp.eq.s32.totalorder %s26, 0
      %p47 = por %p45, %p46
      %p48 = scmp.ne.s32.totalorder %s34, %s35
      %p49 = scmp.eq.s32.totalorder %s27, 1
      %p50 = por %p48, %p49
      %p52 = scmp.ne.s32.totalorder %s35, %s51
      %p53 = scmp.eq.s32.totalorder %s27, 0
      %p54 = por %p52, %p53
      %s55 = ssub.s32 %s21, %s28
      %p56 = scmp.eq.s32.totalorder %s55, 0
      %s58 = sadd.s32 %s57, 1
      %s59 = scalar_select %p56, %s57, %s58
      %p62 = pneg %p56
      %p63 = scmp.eq.s32.totalorder %s21, 1
      %p64 = por %p62, %p63
      %p65 = scmp.ne.s32.totalorder %s57, %s60
      %p66 = scmp.eq.s32.totalorder %s21, 0
      %p67 = por %p65, %p66
      %p68 = scmp.ne.s32.totalorder %s57, %s60
      %p69 = scmp.eq.s32.totalorder %s26, 1
      %p70 = por %p68, %p69
      %p71 = scmp.ne.s32.totalorder %s60, %s61
      %p72 = scmp.eq.s32.totalorder %s26, 0
      %p73 = por %p71, %p72
      %p74 = scmp.ne.s32.totalorder %s60, %s61
      %p75 = scmp.eq.s32.totalorder %s27, 1
      %p76 = por %p74, %p75
      %p78 = scmp.ne.s32.totalorder %s61, %s77
      %p79 = scmp.eq.s32.totalorder %s27, 0
      %p80 = por %p78, %p79
      %s81 = ssub.s32 %s21, %s28
      %p82 = scmp.eq.s32.totalorder %s81, 0
      %s84 = sadd.s32 %s83, 1
      %s85 = scalar_select %p82, %s83, %s84
      %p88 = pneg %p82
      %p89 = scmp.eq.s32.totalorder %s21, 1
      %p90 = por %p88, %p89
      %p91 = scmp.ne.s32.totalorder %s83, %s86
      %p92 = scmp.eq.s32.totalorder %s21, 0
      %p93 = por %p91, %p92
      %p94 = scmp.ne.s32.totalorder %s83, %s86
      %p95 = scmp.eq.s32.totalorder %s26, 1
      %p96 = por %p94, %p95
      %p97 = scmp.ne.s32.totalorder %s86, %s87
      %p98 = scmp.eq.s32.totalorder %s26, 0
      %p99 = por %p97, %p98
      %p100 = scmp.ne.s32.totalorder %s86, %s87
      %p101 = scmp.eq.s32.totalorder %s27, 1
      %p102 = por %p100, %p101
      %p104 = scmp.ne.s32.totalorder %s87, %s103
      %p105 = scmp.eq.s32.totalorder %s27, 0
      %p106 = por %p104, %p105
      %s108 = sadd.s32 %s107, 1
      %p111 = scmp.eq.s32.totalorder %s21, 1
      %p112 = scmp.ne.s32.totalorder %s107, %s109
      %p113 = scmp.eq.s32.totalorder %s21, 0
      %p114 = por %p112, %p113
      %p115 = scmp.ne.s32.totalorder %s107, %s109
      %p116 = scmp.eq.s32.totalorder %s26, 1
      %p117 = por %p115, %p116
      %p118 = scmp.ne.s32.totalorder %s109, %s110
      %p119 = scmp.eq.s32.totalorder %s26, 0
      %p120 = por %p118, %p119
      %p121 = scmp.ne.s32.totalorder %s109, %s110
      %p122 = scmp.eq.s32.totalorder %s27, 1
      %p123 = por %p121, %p122
      %p125 = scmp.ne.s32.totalorder %s110, %s124
      %p126 = scmp.eq.s32.totalorder %s27, 0
      %p127 = por %p125, %p126
      %s129 = sadd.s32 %s128, 1
      %p132 = scmp.eq.s32.totalorder %s21, 1
      %p133 = scmp.ne.s32.totalorder %s128, %s130
      %p134 = scmp.eq.s32.totalorder %s21, 0
      %p135 = por %p133, %p134
      %p136 = scmp.ne.s32.totalorder %s128, %s130
      %p137 = scmp.eq.s32.totalorder %s26, 1
      %p138 = por %p136, %p137
      %p139 = scmp.ne.s32.totalorder %s130, %s131
      %p140 = scmp.eq.s32.totalorder %s26, 0
      %p141 = por %p139, %p140
      %p142 = scmp.ne.s32.totalorder %s130, %s131
      %p143 = scmp.eq.s32.totalorder %s27, 1
      %p144 = por %p142, %p143
      %p146 = scmp.ne.s32.totalorder %s131, %s145
      %p147 = scmp.eq.s32.totalorder %s27, 0
      %p148 = por %p146, %p147
      %s150 = sadd.s32 %s149, 1
      %p153 = scmp.eq.s32.totalorder %s21, 1
      %p154 = scmp.ne.s32.totalorder %s149, %s151
      %p155 = scmp.eq.s32.totalorder %s21, 0
      %p156 = por %p154, %p155
      %p157 = scmp.ne.s32.totalorder %s149, %s151
      %p158 = scmp.eq.s32.totalorder %s26, 1
      %p159 = por %p157, %p158
      %p160 = scmp.ne.s32.totalorder %s151, %s152
      %p161 = scmp.eq.s32.totalorder %s26, 0
      %p162 = por %p160, %p161
      %p163 = scmp.ne.s32.totalorder %s151, %s152
      %p164 = scmp.eq.s32.totalorder %s27, 1
      %p165 = por %p163, %p164
      %p167 = scmp.ne.s32.totalorder %s152, %s166
      %p168 = scmp.eq.s32.totalorder %s27, 0
      %p169 = por %p167, %p168
      %s171 = sadd.s32 %s170, 1
      %p174 = scmp.eq.s32.totalorder %s21, 1
      %p175 = scmp.ne.s32.totalorder %s170, %s172
      %p176 = scmp.eq.s32.totalorder %s21, 0
      %p177 = por %p175, %p176
      %p178 = scmp.ne.s32.totalorder %s170, %s172
      %p179 = scmp.eq.s32.totalorder %s26, 1
      %p180 = por %p178, %p179
      %p181 = scmp.ne.s32.totalorder %s172, %s173
      %p182 = scmp.eq.s32.totalorder %s26, 0
      %p183 = por %p181, %p182
      %p184 = scmp.ne.s32.totalorder %s172, %s173
      %p185 = scmp.eq.s32.totalorder %s27, 1
      %p186 = por %p184, %p185
      %p188 = scmp.ne.s32.totalorder %s173, %s187
      %p189 = scmp.eq.s32.totalorder %s27, 0
      %p190 = por %p188, %p189
      %s192 = sadd.s32 %s191, 1
      %p195 = scmp.eq.s32.totalorder %s21, 1
      %p196 = scmp.ne.s32.totalorder %s191, %s193
      %p197 = scmp.eq.s32.totalorder %s21, 0
      %p198 = por %p196, %p197
      %p199 = scmp.ne.s32.totalorder %s191, %s193
      %p200 = scmp.eq.s32.totalorder %s26, 1
      %p201 = por %p199, %p200
      %p202 = scmp.ne.s32.totalorder %s193, %s194
      %p203 = scmp.eq.s32.totalorder %s26, 0
      %p204 = por %p202, %p203
      %p205 = scmp.ne.s32.totalorder %s193, %s194
      %p206 = scmp.eq.s32.totalorder %s27, 1
      %p207 = por %p205, %p206
      %p209 = scmp.ne.s32.totalorder %s194, %s208
      %p210 = scmp.eq.s32.totalorder %s27, 0
      %p211 = por %p209, %p210
      %s213 = sadd.s32 %s212, 1
      %p216 = scmp.eq.s32.totalorder %s21, 1
      %p217 = scmp.ne.s32.totalorder %s212, %s214
      %p218 = scmp.eq.s32.totalorder %s21, 0
      %p219 = por %p217, %p218
      %p220 = scmp.ne.s32.totalorder %s212, %s214
      %p221 = scmp.eq.s32.totalorder %s26, 1
      %p222 = por %p220, %p221
      %p223 = scmp.ne.s32.totalorder %s214, %s215
      %p224 = scmp.eq.s32.totalorder %s26, 0
      %p225 = por %p223, %p224
      %p226 = scmp.ne.s32.totalorder %s214, %s215
      %p227 = scmp.eq.s32.totalorder %s27, 1
      %p228 = por %p226, %p227
      %p230 = scmp.ne.s32.totalorder %s215, %s229
      %p231 = scmp.eq.s32.totalorder %s27, 0
      %p232 = por %p230, %p231
      %s234 = sadd.s32 %s233, 1
      %p237 = scmp.eq.s32.totalorder %s21, 1
      %p238 = scmp.ne.s32.totalorder %s233, %s235
      %p239 = scmp.eq.s32.totalorder %s21, 0
      %p240 = por %p238, %p239
      %p241 = scmp.ne.s32.totalorder %s233, %s235
      %p242 = scmp.eq.s32.totalorder %s26, 1
      %p243 = por %p241, %p242
      %p244 = scmp.ne.s32.totalorder %s235, %s236
      %p245 = scmp.eq.s32.totalorder %s26, 0
      %p246 = por %p244, %p245
      %p247 = scmp.ne.s32.totalorder %s235, %s236
      %p248 = scmp.eq.s32.totalorder %s27, 1
      %p249 = por %p247, %p248
      %p251 = scmp.ne.s32.totalorder %s236, %s250
      %p252 = scmp.eq.s32.totalorder %s27, 0
      %p253 = por %p251, %p252
      %s254 = ssub.s32 %s21, %s28
      %p255 = scmp.eq.s32.totalorder %s254, 0
      %s257 = sadd.s32 %s256, 1
      %s258 = scalar_select %p255, %s256, %s257
      %p261 = pneg %p255
      %p262 = scmp.eq.s32.totalorder %s21, 1
      %p263 = por %p261, %p262
      %p264 = scmp.ne.s32.totalorder %s256, %s259
      %p265 = scmp.eq.s32.totalorder %s21, 0
      %p266 = por %p264, %p265
      %p267 = scmp.ne.s32.totalorder %s256, %s259
      %p268 = scmp.eq.s32.totalorder %s26, 1
      %p269 = por %p267, %p268
      %p270 = scmp.ne.s32.totalorder %s259, %s260
      %p271 = scmp.eq.s32.totalorder %s26, 0
      %p272 = por %p270, %p271
      %p273 = scmp.ne.s32.totalorder %s259, %s260
      %p274 = scmp.eq.s32.totalorder %s27, 1
      %p275 = por %p273, %p274
      %p277 = scmp.ne.s32.totalorder %s260, %s276
      %p278 = scmp.eq.s32.totalorder %s27, 0
      %p279 = por %p277, %p278
      %p280 = scmp.le.s32.totalorder 1, %s21
      %p281 = scmp.lt.s32.totalorder %s21, 3
      %p282 = pnand %p280, %p281
      %p283 = pneg %p282
      // Predicated region
      $region9: #{tpu_custom_call.1} parent=5 // pred_check
        _
      $region10: #{tpu_custom_call.1} parent=5 // pred_check_branch
        %285 = sbr.rel (%p282) target = $region12
      $region11: #{tpu_custom_call.1} parent=5 // pred_region
        %s286 = ssub.s32 %s21, 1
        // Predicated region
        $region13: #{tpu_custom_call.1} parent=11 // pred_check
          %p287 = pneg %p120
        $region14: #{tpu_custom_call.1} parent=11 // pred_check_branch
          %289 = sbr.rel (%p287) target = $region16
        $region15: #{tpu_custom_call.1} parent=11 // pred_region
          _
        $region16: #{tpu_custom_call.1} parent=11 // pred_fallthru
          _
        // Predicated region
        $region17: #{tpu_custom_call.1} parent=11 // pred_check
          %p290 = pneg %p141
        $region18: #{tpu_custom_call.1} parent=11 // pred_check_branch
          %292 = sbr.rel (%p290) target = $region20
        $region19: #{tpu_custom_call.1} parent=11 // pred_region
          _
        $region20: #{tpu_custom_call.1} parent=11 // pred_fallthru
          _
        // Predicated region
        $region21: #{tpu_custom_call.1} parent=11 // pred_check
          %p293 = pneg %p162
        $region22: #{tpu_custom_call.1} parent=11 // pred_check_branch
          %295 = sbr.rel (%p293) target = $region24
        $region23: #{tpu_custom_call.1} parent=11 // pred_region
          _
        $region24: #{tpu_custom_call.1} parent=11 // pred_fallthru
          _
        // Predicated region
        $region25: #{tpu_custom_call.1} parent=11 // pred_check
          %p296 = pneg %p183
        $region26: #{tpu_custom_call.1} parent=11 // pred_check_branch
          %298 = sbr.rel (%p296) target = $region28
        $region27: #{tpu_custom_call.1} parent=11 // pred_region
          %s300 = ssub.s32 4096, 4096
          %301 = vsyncadd [#allocation4], %s300
          %s302 = sshll.u32 [#allocation3], 4
          %s303 = int_to_ptr.vmem [resolvable:$true] %s302
          %308 = dma.hbm_to_vmem [thread:$0]  %s6, 4096, %s303, [#allocation4], 128, 128, 8
        $region28: #{tpu_custom_call.1} parent=11 // pred_fallthru
          _
        // Predicated region
        $region29: #{tpu_custom_call.1} parent=11 // pred_check
          %p309 = pneg %p204
        $region30: #{tpu_custom_call.1} parent=11 // pred_check_branch
          %311 = sbr.rel (%p309) target = $region32
        $region31: #{tpu_custom_call.1} parent=11 // pred_region
          %s313 = ssub.s32 32, 32
          %314 = vsyncadd [#allocation7], %s313
          %s316 = sshll.u32 [#allocation6], 4
          %s317 = int_to_ptr.vmem [resolvable:$true] %s316
          %319 = dma.hbm_to_vmem [thread:$0]  %s7, 32, %s317, [#allocation7]
        $region32: #{tpu_custom_call.1} parent=11 // pred_fallthru
          _
        // Predicated region
        $region33: #{tpu_custom_call.1} parent=11 // pred_check
          %p320 = pneg %p225
        $region34: #{tpu_custom_call.1} parent=11 // pred_check_branch
          %322 = sbr.rel (%p320) target = $region36
        $region35: #{tpu_custom_call.1} parent=11 // pred_region
          %s324 = ssub.s32 32, 32
          %325 = vsyncadd [#allocation7], %s324
          %s327 = sshll.u32 [#allocation8], 4
          %s328 = int_to_ptr.vmem [resolvable:$true] %s327
          %330 = dma.hbm_to_vmem [thread:$0]  %s8, 32, %s328, [#allocation7]
        $region36: #{tpu_custom_call.1} parent=11 // pred_fallthru
          _
        // Predicated region
        $region37: #{tpu_custom_call.1} parent=11 // pred_check
          %p331 = pneg %p246
        $region38: #{tpu_custom_call.1} parent=11 // pred_check_branch
          %333 = sbr.rel (%p331) target = $region40
        $region39: #{tpu_custom_call.1} parent=11 // pred_region
          _
        $region40: #{tpu_custom_call.1} parent=11 // pred_fallthru
          _
      $region12: #{tpu_custom_call.1} parent=5 // pred_fallthru
        _
      %p334 = scmp.lt.s32.totalorder %s21, 2
      // Predicated region
      $region41: #{tpu_custom_call.1} parent=5 // pred_check
        %p335 = pneg %p334
      $region42: #{tpu_custom_call.1} parent=5 // pred_check_branch
        %337 = sbr.rel (%p335) target = $region44
      $region43: #{tpu_custom_call.1} parent=5 // pred_region
        // Predicated region
        $region45: #{tpu_custom_call.1} parent=43 // pred_check
          %p338 = pneg %p41
        $region46: #{tpu_custom_call.1} parent=43 // pred_check_branch
          %340 = sbr.rel (%p338) target = $region48
        $region47: #{tpu_custom_call.1} parent=43 // pred_region
          %p341 = scmp.lt.s32.totalorder %s21, 1
          %s342 = scalar_select %p341, %s21, 1
          %s343 = smul.addr %s342, 8
          %s344 = scalar_lea.vmem %s0, %s343
        $region48: #{tpu_custom_call.1} parent=43 // pred_fallthru
          _
        // Predicated region
        $region49: #{tpu_custom_call.1} parent=43 // pred_check
          %p345 = pneg %p67
        $region50: #{tpu_custom_call.1} parent=43 // pred_check_branch
          %347 = sbr.rel (%p345) target = $region52
        $region51: #{tpu_custom_call.1} parent=43 // pred_region
          %p348 = scmp.lt.s32.totalorder %s21, 1
          %s349 = scalar_select %p348, %s21, 1
          %s350 = smul.addr %s349, 8
          %s351 = scalar_lea.vmem %s1, %s350
        $region52: #{tpu_custom_call.1} parent=43 // pred_fallthru
          _
        // Predicated region
        $region53: #{tpu_custom_call.1} parent=43 // pred_check
          %p352 = pneg %p93
        $region54: #{tpu_custom_call.1} parent=43 // pred_check_branch
          %354 = sbr.rel (%p352) target = $region56
        $region55: #{tpu_custom_call.1} parent=43 // pred_region
          %p355 = scmp.lt.s32.totalorder %s21, 1
          %s356 = scalar_select %p355, %s21, 1
          %s357 = smul.addr %s356, 8
          %s358 = scalar_lea.vmem %s2, %s357
        $region56: #{tpu_custom_call.1} parent=43 // pred_fallthru
          _
      $region44: #{tpu_custom_call.1} parent=5 // pred_fallthru
        _
      %p359 = scmp.le.s32.totalorder 1, %s21
      %p360 = scmp.lt.s32.totalorder %s21, 3
      %p361 = pnand %p359, %p360
      %p362 = pneg %p361
      // Predicated region
      $region57: #{tpu_custom_call.1} parent=5 // pred_check
        _
      $region58: #{tpu_custom_call.1} parent=5 // pred_check_branch
        %364 = sbr.rel (%p361) target = $region60
      $region59: #{tpu_custom_call.1} parent=5 // pred_region
        %s365 = ssub.s32 %s21, 1
        // Predicated region
        $region61: #{tpu_custom_call.1} parent=59 // pred_check
          %p366 = pneg %p183
        $region62: #{tpu_custom_call.1} parent=59 // pred_check_branch
          %368 = sbr.rel (%p366) target = $region64
        $region63: #{tpu_custom_call.1} parent=59 // pred_region
          %369 = dma.done [#allocation4], 4096
        $region64: #{tpu_custom_call.1} parent=59 // pred_fallthru
          _
        // Predicated region
        $region65: #{tpu_custom_call.1} parent=59 // pred_check
          %p370 = pneg %p204
        $region66: #{tpu_custom_call.1} parent=59 // pred_check_branch
          %372 = sbr.rel (%p370) target = $region68
        $region67: #{tpu_custom_call.1} parent=59 // pred_region
          %373 = dma.done [#allocation7], 32
        $region68: #{tpu_custom_call.1} parent=59 // pred_fallthru
          _
        // Predicated region
        $region69: #{tpu_custom_call.1} parent=59 // pred_check
          %p374 = pneg %p225
        $region70: #{tpu_custom_call.1} parent=59 // pred_check_branch
          %376 = sbr.rel (%p374) target = $region72
        $region71: #{tpu_custom_call.1} parent=59 // pred_region
          %377 = dma.done [#allocation7], 32
        $region72: #{tpu_custom_call.1} parent=59 // pred_fallthru
          _
        %p378 = scmp.lt.s32.totalorder %s26, 1
        %s379 = scalar_select %p378, %s26, 1
        %s380 = smul.addr %s379, 8
        %s381 = scalar_lea.vmem %s0, %s380
        %p382 = pneg %p47
        %p383 = pneg %p44
        %p384 = scmp.lt.s32.totalorder %s26, 1
        %s385 = scalar_select %p384, %s26, 1
        %s386 = smul.addr %s385, 8
        %s387 = scalar_lea.vmem %s1, %s386
        %p388 = pneg %p73
        %p389 = pneg %p70
        %p390 = scmp.lt.s32.totalorder %s26, 1
        %s391 = scalar_select %p390, %s26, 1
        %s392 = smul.addr %s391, 8
        %s393 = scalar_lea.vmem %s2, %s392
        %p394 = pneg %p99
        %p395 = pneg %p96
        %p396 = pneg %p120
        %p397 = pneg %p117
        %p398 = pneg %p141
        %p399 = pneg %p138
        %p400 = pneg %p162
        %p401 = pneg %p159
        %p402 = pneg %p183
        %p403 = pneg %p180
        %p404 = pneg %p204
        %p405 = pneg %p201
        %p406 = pneg %p225
        %p407 = pneg %p222
        %p408 = pneg %p246
        %p409 = pneg %p243
        %p410 = pneg %p272
        %p411 = pneg %p269
        %s412 = sand.u32 %s259, 1
        %s413 = scalar_lea.sflag [#allocation5], %s412
        %s414 = sand.u32 %s259, 1
        %s415 = smul.addr %s414, 8
        %s416 = scalar_lea.vmem [#allocation9], %s415
        %p417 = scmp.lt.s32.totalorder %s26, 1
        %s418 = scalar_select %p417, %s26, 1
        %s419 = smul.addr %s418, 8
        %s420 = scalar_lea.vmem %s0, %s419
        %p421 = scmp.lt.s32.totalorder %s26, 1
        %s422 = scalar_select %p421, %s26, 1
        %s423 = smul.addr %s422, 8
        %s424 = scalar_lea.vmem %s1, %s423
        %p425 = scmp.lt.s32.totalorder %s26, 1
        %s426 = scalar_select %p425, %s26, 1
        %s427 = smul.addr %s426, 8
        %s428 = scalar_lea.vmem %s2, %s427
        %v430 = vld [vmem:[%s420] sm:$0xff]
        %vm431 = vcmask 130048
        %432 = vst.msk [vmem:[#allocation2] sm:$0xff] %vm431, %v430
        %v433 = vld [vmem:[%s424] sm:$0xff]
        %435 = vrot.lane.b32.xlu0 %v433, 16
        %v436 = vpop.permute.xlu0 %435
        %vm438 = vcmask 162944
        %439 = vst.msk [vmem:[#allocation2] sm:$0xff] %vm438, %v436
        %v440 = vld [vmem:[%s428] sm:$0xff]
        %442 = vrot.lane.b32.xlu0 %v440, 20
        %v443 = vpop.permute.xlu0 %442
        %vm445 = vcmask 687264
        %446 = vst.msk [vmem:[#allocation2] sm:$0xff] %vm445, %v443
        %vm447 = vcmask 1048224
        %448 = vst.msk [vmem:[#allocation2] sm:$0xff] %vm447, 0.0
        %v449 = vld [vmem:[#allocation2] sm:$0xff]
        %v450 = vpack.c.bf16 %v449, %v449
        %v451 = vld [vmem:[%s3] sm:$0xff]
        %v452 = vld [vmem:[%s3 + $0x8] sm:$0xff]
        %v453 = vld [vmem:[%s3 + $0x10] sm:$0xff]
        %v454 = vld [vmem:[%s3 + $0x18] sm:$0xff]
        %v455 = vld [vmem:[%s3 + $0x20] sm:$0xff]
        %v456 = vld [vmem:[%s3 + $0x28] sm:$0xff]
        %v457 = vld [vmem:[%s3 + $0x30] sm:$0xff]
        %v458 = vld [vmem:[%s3 + $0x38] sm:$0xff]
        %v459 = vld [vmem:[%s3 + $0x40] sm:$0xff]
        %v460 = vld [vmem:[%s3 + $0x48] sm:$0xff]
        %v461 = vld [vmem:[%s3 + $0x50] sm:$0xff]
        %v462 = vld [vmem:[%s3 + $0x58] sm:$0xff]
        %v463 = vld [vmem:[%s3 + $0x60] sm:$0xff]
        %v464 = vld [vmem:[%s3 + $0x68] sm:$0xff]
        %v465 = vld [vmem:[%s3 + $0x70] sm:$0xff]
        %v466 = vld [vmem:[%s3 + $0x78] sm:$0xff]
        %v483 = vunpack.c.l.b16 %v451
        %v484 = vunpack.c.h.b16 %v451
        %v485 = vunpack.c.l.b16 %v452
        %v486 = vunpack.c.h.b16 %v452
        %v487 = vunpack.c.l.b16 %v453
        %v488 = vunpack.c.h.b16 %v453
        %v489 = vunpack.c.l.b16 %v454
        %v490 = vunpack.c.h.b16 %v454
        %v491 = vunpack.c.l.b16 %v455
        %v492 = vunpack.c.h.b16 %v455
        %v493 = vunpack.c.l.b16 %v456
        %v494 = vunpack.c.h.b16 %v456
        %v495 = vunpack.c.l.b16 %v457
        %v496 = vunpack.c.h.b16 %v457
        %v497 = vunpack.c.l.b16 %v458
        %v498 = vunpack.c.h.b16 %v458
        %v499 = vunpack.c.l.b16 %v459
        %v500 = vunpack.c.h.b16 %v459
        %v501 = vunpack.c.l.b16 %v460
        %v502 = vunpack.c.h.b16 %v460
        %v503 = vunpack.c.l.b16 %v461
        %v504 = vunpack.c.h.b16 %v461
        %v505 = vunpack.c.l.b16 %v462
        %v506 = vunpack.c.h.b16 %v462
        %v507 = vunpack.c.l.b16 %v463
        %v508 = vunpack.c.h.b16 %v463
        %v509 = vunpack.c.l.b16 %v464
        %v510 = vunpack.c.h.b16 %v464
        %v511 = vunpack.c.l.b16 %v465
        %v512 = vunpack.c.h.b16 %v465
        %v513 = vunpack.c.l.b16 %v466
        %v514 = vunpack.c.h.b16 %v466
        %v515 = vpack.c.b16 %v485, %v483
        %v516 = vpack.c.b16 %v486, %v484
        %v517 = vpack.c.b16 %v489, %v487
        %v518 = vpack.c.b16 %v490, %v488
        %v519 = vpack.c.b16 %v493, %v491
        %v520 = vpack.c.b16 %v494, %v492
        %v521 = vpack.c.b16 %v497, %v495
        %v522 = vpack.c.b16 %v498, %v496
        %v523 = vpack.c.b16 %v501, %v499
        %v524 = vpack.c.b16 %v502, %v500
        %v525 = vpack.c.b16 %v505, %v503
        %v526 = vpack.c.b16 %v506, %v504
        %v527 = vpack.c.b16 %v509, %v507
        %v528 = vpack.c.b16 %v510, %v508
        %v529 = vpack.c.b16 %v513, %v511
        %v530 = vpack.c.b16 %v514, %v512
        %547 = vmatprep.subr.bf16.mxu0 %v530
        %548 = vmatpush1.bf16.msra.mxu0 %v529
        %549 = vmatprep.subr.bf16.mxu0 %v528
        %550 = vmatpush1.bf16.msra.mxu0 %v527
        %551 = vmatprep.subr.bf16.mxu0 %v526
        %552 = vmatpush1.bf16.msra.mxu0 %v525
        %553 = vmatprep.subr.bf16.mxu0 %v524
        %554 = vmatpush1.bf16.msra.mxu0 %v523
        %555 = vmatprep.subr.bf16.mxu0 %v522
        %556 = vmatpush1.bf16.msra.mxu0 %v521
        %557 = vmatprep.subr.bf16.mxu0 %v520
        %558 = vmatpush1.bf16.msra.mxu0 %v519
        %559 = vmatprep.subr.bf16.mxu0 %v518
        %560 = vmatpush1.bf16.msra.mxu0 %v517
        %561 = vmatprep.subr.bf16.mxu0 %v516
        %562 = vmatpush1.bf16.msra.mxu0 %v515
        %563 = vmatprep.subr.bf16.mxu0 0
        %564 = vmatpush2.bf16.msra.mxu0 0
        %565 = vmatprep.subr.bf16.mxu0 0
        %566 = vmatpush2.bf16.msra.mxu0 0
        %567 = vmatprep.subr.bf16.mxu0 0
        %568 = vmatpush2.bf16.msra.mxu0 0
        %569 = vmatprep.subr.bf16.mxu0 0
        %570 = vmatpush2.bf16.msra.mxu0 0
        %571 = vmatprep.subr.bf16.mxu0 0
        %572 = vmatpush2.bf16.msra.mxu0 0
        %573 = vmatprep.subr.bf16.mxu0 0
        %574 = vmatpush2.bf16.msra.mxu0 0
        %575 = vmatprep.subr.bf16.mxu0 0
        %576 = vmatpush2.bf16.msra.mxu0 0
        %577 = vmatprep.subr.bf16.mxu0 0
        %578 = vmatpush2.bf16.msra.mxu0 0
        %579 = vmatprep.mubr.bf16.mxu0 0
        %580 = vmatmul.mubr.bf16.gmra.mxu0 %v450
        %v581 = vpop.f32.mrf.mxu0
        %v582 = vadd.f32 0.0, %v581
        %v583 = vpop.f32.mrf.mxu0
        %v584 = vadd.f32 0.0, %v583
        %v585 = vpop.f32.mrf.mxu0
        %v586 = vpop.f32.mrf.mxu0
        %587 = vdwg.mxu0
        %v588 = vld [vmem:[%s4] sm:$0x3]
        %v589 = vld [vmem:[%s5] sm:$0x3]
        %v590 = vadd.f32 %v582, %v584
        %591 = vadd.xlane.f32.xlu0 %v590
        %v592 = vpop.xlane.xlu0 %591
        %v593 = vrcp.pop 256.0
        %v594 = vmul.f32 %v592, %v593
        %v595 = vsub.f32 %v582, %v594
        %v596 = vsub.f32 %v584, %v594
        %v597 = vmul.f32 %v595, %v595
        %v598 = vmul.f32 %v596, %v596
        %v599 = vadd.f32 %v597, %v598
        %600 = vadd.xlane.f32.xlu0 %v599
        %v601 = vpop.xlane.xlu0 %600
        %v602 = vmul.f32 %v601, %v593
        %v603 = vadd.f32 %v602, 0.001
        %v604 = vrsqrt.pop %v603
        %v605 = vmul.f32 %v595, %v604
        %v606 = vmul.f32 %v596, %v604
        %v608 = vlaneseq
        %v609 = vshrl.u32 %v608, 7
        %v610 = vsub.s32 0, %v609
        %v611 = vrot.slane %v588, %v610
        %v612 = vlaneseq
        %v613 = vshrl.u32 %v612, 7
        %v614 = vsub.s32 1, %v613
        %v615 = vrot.slane %v588, %v614
        %v618 = vmul.f32 %v605, %v611
        %v619 = vmul.f32 %v606, %v615
        %v621 = vlaneseq
        %v622 = vshrl.u32 %v621, 7
        %v623 = vsub.s32 0, %v622
        %v624 = vrot.slane %v589, %v623
        %v625 = vlaneseq
        %v626 = vshrl.u32 %v625, 7
        %v627 = vsub.s32 1, %v626
        %v628 = vrot.slane %v589, %v627
        %v631 = vadd.f32 %v618, %v624
        %v632 = vadd.f32 %v619, %v628
        %v633 = vsub.f32 0.0, %v631
        %v634 = vsub.f32 0.0, %v632
        %v635 = vmul.f32 %v633, 1.442695
        %v636 = vpow.pop %v635
        %v637 = vmul.f32 %v634, 1.442695
        %v638 = vpow.pop %v637
        %v639 = vadd.f32 %v636, 1.0
        %v640 = vadd.f32 %v638, 1.0
        %v641 = vrcp.pop %v639
        %v642 = vrcp.pop %v640
        %v643 = vmul.f32 %v631, %v641
        %v644 = vmul.f32 %v632, %v642
        %v645 = vpack.c.bf16 %v643, %v643
        %v646 = vpack.c.bf16 %v644, %v644
        %v647 = vld [vmem:[#allocation3] sm:$0xff]
        %v648 = vld [vmem:[#allocation3 + $0x8] sm:$0xff]
        %v649 = vld [vmem:[#allocation3 + $0x10] sm:$0xff]
        %v650 = vld [vmem:[#allocation3 + $0x18] sm:$0xff]
        %v651 = vld [vmem:[#allocation3 + $0x20] sm:$0xff]
        %v652 = vld [vmem:[#allocation3 + $0x28] sm:$0xff]
        %v653 = vld [vmem:[#allocation3 + $0x30] sm:$0xff]
        %v654 = vld [vmem:[#allocation3 + $0x38] sm:$0xff]
        %v655 = vld [vmem:[#allocation3 + $0x40] sm:$0xff]
        %v656 = vld [vmem:[#allocation3 + $0x48] sm:$0xff]
        %v657 = vld [vmem:[#allocation3 + $0x50] sm:$0xff]
        %v658 = vld [vmem:[#allocation3 + $0x58] sm:$0xff]
        %v659 = vld [vmem:[#allocation3 + $0x60] sm:$0xff]
        %v660 = vld [vmem:[#allocation3 + $0x68] sm:$0xff]
        %v661 = vld [vmem:[#allocation3 + $0x70] sm:$0xff]
        %v662 = vld [vmem:[#allocation3 + $0x78] sm:$0xff]
        %v663 = vld [vmem:[#allocation3 + $0x80] sm:$0xff]
        %v664 = vld [vmem:[#allocation3 + $0x88] sm:$0xff]
        %v665 = vld [vmem:[#allocation3 + $0x90] sm:$0xff]
        %v666 = vld [vmem:[#allocation3 + $0x98] sm:$0xff]
        %v667 = vld [vmem:[#allocation3 + $0xa0] sm:$0xff]
        %v668 = vld [vmem:[#allocation3 + $0xa8] sm:$0xff]
        %v669 = vld [vmem:[#allocation3 + $0xb0] sm:$0xff]
        %v670 = vld [vmem:[#allocation3 + $0xb8] sm:$0xff]
        %v671 = vld [vmem:[#allocation3 + $0xc0] sm:$0xff]
        %v672 = vld [vmem:[#allocation3 + $0xc8] sm:$0xff]
        %v673 = vld [vmem:[#allocation3 + $0xd0] sm:$0xff]
        %v674 = vld [vmem:[#allocation3 + $0xd8] sm:$0xff]
        %v675 = vld [vmem:[#allocation3 + $0xe0] sm:$0xff]
        %v676 = vld [vmem:[#allocation3 + $0xe8] sm:$0xff]
        %v677 = vld [vmem:[#allocation3 + $0xf0] sm:$0xff]
        %v678 = vld [vmem:[#allocation3 + $0xf8] sm:$0xff]
        %v711 = vunpack.c.l.b16 %v647
        %v712 = vunpack.c.h.b16 %v647
        %v713 = vunpack.c.l.b16 %v648
        %v714 = vunpack.c.h.b16 %v648
        %v715 = vunpack.c.l.b16 %v649
        %v716 = vunpack.c.h.b16 %v649
        %v717 = vunpack.c.l.b16 %v650
        %v718 = vunpack.c.h.b16 %v650
        %v719 = vunpack.c.l.b16 %v651
        %v720 = vunpack.c.h.b16 %v651
        %v721 = vunpack.c.l.b16 %v652
        %v722 = vunpack.c.h.b16 %v652
        %v723 = vunpack.c.l.b16 %v653
        %v724 = vunpack.c.h.b16 %v653
        %v725 = vunpack.c.l.b16 %v654
        %v726 = vunpack.c.h.b16 %v654
        %v727 = vunpack.c.l.b16 %v655
        %v728 = vunpack.c.h.b16 %v655
        %v729 = vunpack.c.l.b16 %v656
        %v730 = vunpack.c.h.b16 %v656
        %v731 = vunpack.c.l.b16 %v657
        %v732 = vunpack.c.h.b16 %v657
        %v733 = vunpack.c.l.b16 %v658
        %v734 = vunpack.c.h.b16 %v658
        %v735 = vunpack.c.l.b16 %v659
        %v736 = vunpack.c.h.b16 %v659
        %v737 = vunpack.c.l.b16 %v660
        %v738 = vunpack.c.h.b16 %v660
        %v739 = vunpack.c.l.b16 %v661
        %v740 = vunpack.c.h.b16 %v661
        %v741 = vunpack.c.l.b16 %v662
        %v742 = vunpack.c.h.b16 %v662
        %v743 = vunpack.c.l.b16 %v663
        %v744 = vunpack.c.h.b16 %v663
        %v745 = vunpack.c.l.b16 %v664
        %v746 = vunpack.c.h.b16 %v664
        %v747 = vunpack.c.l.b16 %v665
        %v748 = vunpack.c.h.b16 %v665
        %v749 = vunpack.c.l.b16 %v666
        %v750 = vunpack.c.h.b16 %v666
        %v751 = vunpack.c.l.b16 %v667
        %v752 = vunpack.c.h.b16 %v667
        %v753 = vunpack.c.l.b16 %v668
        %v754 = vunpack.c.h.b16 %v668
        %v755 = vunpack.c.l.b16 %v669
        %v756 = vunpack.c.h.b16 %v669
        %v757 = vunpack.c.l.b16 %v670
        %v758 = vunpack.c.h.b16 %v670
        %v759 = vunpack.c.l.b16 %v671
        %v760 = vunpack.c.h.b16 %v671
        %v761 = vunpack.c.l.b16 %v672
        %v762 = vunpack.c.h.b16 %v672
        %v763 = vunpack.c.l.b16 %v673
        %v764 = vunpack.c.h.b16 %v673
        %v765 = vunpack.c.l.b16 %v674
        %v766 = vunpack.c.h.b16 %v674
        %v767 = vunpack.c.l.b16 %v675
        %v768 = vunpack.c.h.b16 %v675
        %v769 = vunpack.c.l.b16 %v676
        %v770 = vunpack.c.h.b16 %v676
        %v771 = vunpack.c.l.b16 %v677
        %v772 = vunpack.c.h.b16 %v677
        %v773 = vunpack.c.l.b16 %v678
        %v774 = vunpack.c.h.b16 %v678
        %v775 = vpack.c.b16 %v713, %v711
        %v776 = vpack.c.b16 %v714, %v712
        %v777 = vpack.c.b16 %v717, %v715
        %v778 = vpack.c.b16 %v718, %v716
        %v779 = vpack.c.b16 %v721, %v719
        %v780 = vpack.c.b16 %v722, %v720
        %v781 = vpack.c.b16 %v725, %v723
        %v782 = vpack.c.b16 %v726, %v724
        %v783 = vpack.c.b16 %v729, %v727
        %v784 = vpack.c.b16 %v730, %v728
        %v785 = vpack.c.b16 %v733, %v731
        %v786 = vpack.c.b16 %v734, %v732
        %v787 = vpack.c.b16 %v737, %v735
        %v788 = vpack.c.b16 %v738, %v736
        %v789 = vpack.c.b16 %v741, %v739
        %v790 = vpack.c.b16 %v742, %v740
        %v791 = vpack.c.b16 %v745, %v743
        %v792 = vpack.c.b16 %v746, %v744
        %v793 = vpack.c.b16 %v749, %v747
        %v794 = vpack.c.b16 %v750, %v748
        %v795 = vpack.c.b16 %v753, %v751
        %v796 = vpack.c.b16 %v754, %v752
        %v797 = vpack.c.b16 %v757, %v755
        %v798 = vpack.c.b16 %v758, %v756
        %v799 = vpack.c.b16 %v761, %v759
        %v800 = vpack.c.b16 %v762, %v760
        %v801 = vpack.c.b16 %v765, %v763
        %v802 = vpack.c.b16 %v766, %v764
        %v803 = vpack.c.b16 %v769, %v767
        %v804 = vpack.c.b16 %v770, %v768
        %v805 = vpack.c.b16 %v773, %v771
        %v806 = vpack.c.b16 %v774, %v772
        %839 = vmatprep.subr.bf16.mxu0 %v790
        %840 = vmatpush1.bf16.msra.mxu0 %v789
        %841 = vmatprep.subr.bf16.mxu0 %v788
        %842 = vmatpush1.bf16.msra.mxu0 %v787
        %843 = vmatprep.subr.bf16.mxu0 %v786
        %844 = vmatpush1.bf16.msra.mxu0 %v785
        %845 = vmatprep.subr.bf16.mxu0 %v784
        %846 = vmatpush1.bf16.msra.mxu0 %v783
        %847 = vmatprep.subr.bf16.mxu0 %v782
        %848 = vmatpush1.bf16.msra.mxu0 %v781
        %849 = vmatprep.subr.bf16.mxu0 %v780
        %850 = vmatpush1.bf16.msra.mxu0 %v779
        %851 = vmatprep.subr.bf16.mxu0 %v778
        %852 = vmatpush1.bf16.msra.mxu0 %v777
        %853 = vmatprep.subr.bf16.mxu0 %v776
        %854 = vmatpush1.bf16.msra.mxu0 %v775
        %855 = vmatprep.subr.bf16.mxu0 %v806
        %856 = vmatpush2.bf16.msra.mxu0 %v805
        %857 = vmatprep.subr.bf16.mxu0 %v804
        %858 = vmatpush2.bf16.msra.mxu0 %v803
        %859 = vmatprep.subr.bf16.mxu0 %v802
        %860 = vmatpush2.bf16.msra.mxu0 %v801
        %861 = vmatprep.subr.bf16.mxu0 %v800
        %862 = vmatpush2.bf16.msra.mxu0 %v799
        %863 = vmatprep.subr.bf16.mxu0 %v798
        %864 = vmatpush2.bf16.msra.mxu0 %v797
        %865 = vmatprep.subr.bf16.mxu0 %v796
        %866 = vmatpush2.bf16.msra.mxu0 %v795
        %867 = vmatprep.subr.bf16.mxu0 %v794
        %868 = vmatpush2.bf16.msra.mxu0 %v793
        %869 = vmatprep.subr.bf16.mxu0 %v792
        %870 = vmatpush2.bf16.msra.mxu0 %v791
        %871 = vmatprep.mubr.bf16.mxu0 %v646
        %872 = vmatmul.mubr.bf16.gmra.mxu0 %v645
        %v873 = vpop.f32.mrf.mxu0
        %v874 = vadd.f32 0.0, %v873
        %v875 = vpop.f32.mrf.mxu0
        %v876 = vadd.f32 0.0, %v875
        %v877 = vpop.f32.mrf.mxu0
        %v878 = vpop.f32.mrf.mxu0
        %879 = vdwg.mxu0
        %v880 = vld [vmem:[#allocation6] sm:$0x3]
        %v881 = vld [vmem:[#allocation8] sm:$0x3]
        %v882 = vadd.f32 %v874, %v876
        %883 = vadd.xlane.f32.xlu0 %v882
        %v884 = vpop.xlane.xlu0 %883
        %v885 = vmul.f32 %v884, %v593
        %v886 = vsub.f32 %v874, %v885
        %v887 = vsub.f32 %v876, %v885
        %v888 = vmul.f32 %v886, %v886
        %v889 = vmul.f32 %v887, %v887
        %v890 = vadd.f32 %v888, %v889
        %891 = vadd.xlane.f32.xlu0 %v890
        %v892 = vpop.xlane.xlu0 %891
        %v893 = vmul.f32 %v892, %v593
        %v894 = vadd.f32 %v893, 0.001
        %v895 = vrsqrt.pop %v894
        %v896 = vmul.f32 %v886, %v895
        %v897 = vmul.f32 %v887, %v895
        %v899 = vlaneseq
        %v900 = vshrl.u32 %v899, 7
        %v901 = vsub.s32 0, %v900
        %v902 = vrot.slane %v880, %v901
        %v903 = vlaneseq
        %v904 = vshrl.u32 %v903, 7
        %v905 = vsub.s32 1, %v904
        %v906 = vrot.slane %v880, %v905
        %v909 = vmul.f32 %v896, %v902
        %v910 = vmul.f32 %v897, %v906
        %v912 = vlaneseq
        %v913 = vshrl.u32 %v912, 7
        %v914 = vsub.s32 0, %v913
        %v915 = vrot.slane %v881, %v914
        %v916 = vlaneseq
        %v917 = vshrl.u32 %v916, 7
        %v918 = vsub.s32 1, %v917
        %v919 = vrot.slane %v881, %v918
        %v922 = vadd.f32 %v909, %v915
        %v923 = vadd.f32 %v910, %v919
        %v924 = vsub.f32 0.0, %v922
        %v925 = vsub.f32 0.0, %v923
        %v926 = vmul.f32 %v924, 1.442695
        %v927 = vpow.pop %v926
        %v928 = vmul.f32 %v925, 1.442695
        %v929 = vpow.pop %v928
        %v930 = vadd.f32 %v927, 1.0
        %v931 = vadd.f32 %v929, 1.0
        %v932 = vrcp.pop %v930
        %v933 = vrcp.pop %v931
        %v934 = vmul.f32 %v922, %v932
        %v935 = vmul.f32 %v923, %v933
        %v936 = vpack.c.bf16 %v934, %v934
        %v937 = vpack.c.bf16 %v935, %v935
        %v938 = vld [vmem:[%s9] sm:$0xf]
        %v939 = vld [vmem:[%s9 + $0x4] sm:$0xf]
        %v940 = vld [vmem:[%s9 + $0x8] sm:$0xf]
        %v941 = vld [vmem:[%s9 + $0xc] sm:$0xf]
        %v942 = vld [vmem:[%s9 + $0x10] sm:$0xf]
        %v943 = vld [vmem:[%s9 + $0x14] sm:$0xf]
        %v944 = vld [vmem:[%s9 + $0x18] sm:$0xf]
        %v945 = vld [vmem:[%s9 + $0x1c] sm:$0xf]
        %v946 = vld [vmem:[%s9 + $0x20] sm:$0xf]
        %v947 = vld [vmem:[%s9 + $0x24] sm:$0xf]
        %v948 = vld [vmem:[%s9 + $0x28] sm:$0xf]
        %v949 = vld [vmem:[%s9 + $0x2c] sm:$0xf]
        %v950 = vld [vmem:[%s9 + $0x30] sm:$0xf]
        %v951 = vld [vmem:[%s9 + $0x34] sm:$0xf]
        %v952 = vld [vmem:[%s9 + $0x38] sm:$0xf]
        %v953 = vld [vmem:[%s9 + $0x3c] sm:$0xf]
        %v954 = vld [vmem:[%s9 + $0x40] sm:$0xf]
        %v955 = vld [vmem:[%s9 + $0x44] sm:$0xf]
        %v956 = vld [vmem:[%s9 + $0x48] sm:$0xf]
        %v957 = vld [vmem:[%s9 + $0x4c] sm:$0xf]
        %v958 = vld [vmem:[%s9 + $0x50] sm:$0xf]
        %v959 = vld [vmem:[%s9 + $0x54] sm:$0xf]
        %v960 = vld [vmem:[%s9 + $0x58] sm:$0xf]
        %v961 = vld [vmem:[%s9 + $0x5c] sm:$0xf]
        %v962 = vld [vmem:[%s9 + $0x60] sm:$0xf]
        %v963 = vld [vmem:[%s9 + $0x64] sm:$0xf]
        %v964 = vld [vmem:[%s9 + $0x68] sm:$0xf]
        %v965 = vld [vmem:[%s9 + $0x6c] sm:$0xf]
        %v966 = vld [vmem:[%s9 + $0x70] sm:$0xf]
        %v967 = vld [vmem:[%s9 + $0x74] sm:$0xf]
        %v968 = vld [vmem:[%s9 + $0x78] sm:$0xf]
        %v969 = vld [vmem:[%s9 + $0x7c] sm:$0xf]
        %v1002 = vunpack.c.l.b16 %v938
        %v1003 = vunpack.c.l.b16 %v939
        %v1004 = vunpack.c.l.b16 %v940
        %v1005 = vunpack.c.l.b16 %v941
        %v1006 = vunpack.c.l.b16 %v942
        %v1007 = vunpack.c.l.b16 %v943
        %v1008 = vunpack.c.l.b16 %v944
        %v1009 = vunpack.c.l.b16 %v945
        %v1010 = vunpack.c.l.b16 %v946
        %v1011 = vunpack.c.l.b16 %v947
        %v1012 = vunpack.c.l.b16 %v948
        %v1013 = vunpack.c.l.b16 %v949
        %v1014 = vunpack.c.l.b16 %v950
        %v1015 = vunpack.c.l.b16 %v951
        %v1016 = vunpack.c.l.b16 %v952
        %v1017 = vunpack.c.l.b16 %v953
        %v1018 = vunpack.c.l.b16 %v954
        %v1019 = vunpack.c.l.b16 %v955
        %v1020 = vunpack.c.l.b16 %v956
        %v1021 = vunpack.c.l.b16 %v957
        %v1022 = vunpack.c.l.b16 %v958
        %v1023 = vunpack.c.l.b16 %v959
        %v1024 = vunpack.c.l.b16 %v960
        %v1025 = vunpack.c.l.b16 %v961
        %v1026 = vunpack.c.l.b16 %v962
        %v1027 = vunpack.c.l.b16 %v963
        %v1028 = vunpack.c.l.b16 %v964
        %v1029 = vunpack.c.l.b16 %v965
        %v1030 = vunpack.c.l.b16 %v966
        %v1031 = vunpack.c.l.b16 %v967
        %v1032 = vunpack.c.l.b16 %v968
        %v1033 = vunpack.c.l.b16 %v969
        %v1034 = vpack.c.b16 %v1003, %v1002
        %v1035 = vpack.c.b16 %v1005, %v1004
        %v1036 = vpack.c.b16 %v1007, %v1006
        %v1037 = vpack.c.b16 %v1009, %v1008
        %v1038 = vpack.c.b16 %v1011, %v1010
        %v1039 = vpack.c.b16 %v1013, %v1012
        %v1040 = vpack.c.b16 %v1015, %v1014
        %v1041 = vpack.c.b16 %v1017, %v1016
        %v1042 = vpack.c.b16 %v1019, %v1018
        %v1043 = vpack.c.b16 %v1021, %v1020
        %v1044 = vpack.c.b16 %v1023, %v1022
        %v1045 = vpack.c.b16 %v1025, %v1024
        %v1046 = vpack.c.b16 %v1027, %v1026
        %v1047 = vpack.c.b16 %v1029, %v1028
        %v1048 = vpack.c.b16 %v1031, %v1030
        %v1049 = vpack.c.b16 %v1033, %v1032
        %1066 = vmatprep.subr.bf16.mxu0 0
        %1067 = vmatpush1.bf16.msra.mxu0 %v1041
        %1068 = vmatprep.subr.bf16.mxu0 0
        %1069 = vmatpush1.bf16.msra.mxu0 %v1040
        %1070 = vmatprep.subr.bf16.mxu0 0
        %1071 = vmatpush1.bf16.msra.mxu0 %v1039
        %1072 = vmatprep.subr.bf16.mxu0 0
        %1073 = vmatpush1.bf16.msra.mxu0 %v1038
        %1074 = vmatprep.subr.bf16.mxu0 0
        %1075 = vmatpush1.bf16.msra.mxu0 %v1037
        %1076 = vmatprep.subr.bf16.mxu0 0
        %1077 = vmatpush1.bf16.msra.mxu0 %v1036
        %1078 = vmatprep.subr.bf16.mxu0 0
        %1079 = vmatpush1.bf16.msra.mxu0 %v1035
        %1080 = vmatprep.subr.bf16.mxu0 0
        %1081 = vmatpush1.bf16.msra.mxu0 %v1034
        %1082 = vmatprep.subr.bf16.mxu0 0
        %1083 = vmatpush2.bf16.msra.mxu0 %v1049
        %1084 = vmatprep.subr.bf16.mxu0 0
        %1085 = vmatpush2.bf16.msra.mxu0 %v1048
        %1086 = vmatprep.subr.bf16.mxu0 0
        %1087 = vmatpush2.bf16.msra.mxu0 %v1047
        %1088 = vmatprep.subr.bf16.mxu0 0
        %1089 = vmatpush2.bf16.msra.mxu0 %v1046
        %1090 = vmatprep.subr.bf16.mxu0 0
        %1091 = vmatpush2.bf16.msra.mxu0 %v1045
        %1092 = vmatprep.subr.bf16.mxu0 0
        %1093 = vmatpush2.bf16.msra.mxu0 %v1044
        %1094 = vmatprep.subr.bf16.mxu0 0
        %1095 = vmatpush2.bf16.msra.mxu0 %v1043
        %1096 = vmatprep.subr.bf16.mxu0 0
        %1097 = vmatpush2.bf16.msra.mxu0 %v1042
        %1098 = vmatprep.mubr.bf16.mxu0 %v937
        %1099 = vmatmul.mubr.bf16.gmra.mxu0 %v936
        %v1100 = vpop.f32.mrf.mxu0
        %v1101 = vadd.f32 0.0, %v1100
        %v1102 = vpop.f32.mrf.mxu0
        %v1103 = vpop.f32.mrf.mxu0
        %v1104 = vpop.f32.mrf.mxu0
        %1105 = vdwg.mxu0
        %v1106 = vsub.f32 0.0, %v1101
        %v1107 = vmul.f32 %v1106, 1.442695
        %v1108 = vpow.pop %v1107
        %v1109 = vadd.f32 %v1108, 1.0
        %v1110 = vrcp.pop %v1109
        %v1111 = vmul.f32 %v1101, %v1110
        %v1112 = vadd.f32 %v1111, 1e-12
        %vm1113 = vcmask 261120
        %1114 = vst.msk [vmem:[%s416] sm:$0xff] %vm1113, %v1112
        %s1115 = sand.u32 %s259, 1
        %s1116 = scalar_lea.sflag [#allocation5], %s1115
        %s1117 = sand.u32 %s259, 1
        %s1118 = smul.addr %s1117, 8
        %s1119 = scalar_lea.vmem [#allocation9], %s1118
        // Predicated region
        $region73: #{tpu_custom_call.1} parent=59 // pred_check
          %p1120 = pneg %p269
        $region74: #{tpu_custom_call.1} parent=59 // pred_check_branch
          %1122 = sbr.rel (%p1120) target = $region76
        $region75: #{tpu_custom_call.1} parent=59 // pred_region
          %s1124 = ssub.s32 128, 128
          %1125 = vsyncadd %s1116, %s1124
          %s1126 = smul.addr %s26, 128
          %s1127 = scalar_lea.hbm %s10, %s1126
          %s1129 = sshll.u32 %s1119, 4
          %s1130 = int_to_ptr.vmem [resolvable:$true] %s1129
          %1132 = dma.vmem_to_hbm [thread:$0]  %s1130, 128, %s1127, %s1116
        $region76: #{tpu_custom_call.1} parent=59 // pred_fallthru
          _
      $region60: #{tpu_custom_call.1} parent=5 // pred_fallthru
        _
      %p1133 = scmp.le.s32.totalorder 2, %s21
      // Predicated region
      $region77: #{tpu_custom_call.1} parent=5 // pred_check
        %p1134 = pneg %p1133
      $region78: #{tpu_custom_call.1} parent=5 // pred_check_branch
        %1136 = sbr.rel (%p1134) target = $region80
      $region79: #{tpu_custom_call.1} parent=5 // pred_region
        %s1137 = ssub.s32 %s21, 2
        // Predicated region
        $region81: #{tpu_custom_call.1} parent=79 // pred_check
          %p1138 = pneg %p275
        $region82: #{tpu_custom_call.1} parent=79 // pred_check_branch
          %1140 = sbr.rel (%p1138) target = $region84
        $region83: #{tpu_custom_call.1} parent=79 // pred_region
          %s1141 = sand.u32 %s260, 1
          %s1142 = scalar_lea.sflag [#allocation5], %s1141
          %s1143 = sand.u32 %s260, 1
          %s1144 = smul.addr %s1143, 8
          %s1145 = scalar_lea.vmem [#allocation9], %s1144
          %1146 = dma.done %s1142, 128
        $region84: #{tpu_custom_call.1} parent=79 // pred_fallthru
          _
      $region80: #{tpu_custom_call.1} parent=5 // pred_fallthru
        _
    $region6: #{tpu_custom_call.1} parent=1 // loop_footer
      %s25 = sadd.s32 1, %s21
    $region7: #{tpu_custom_call.1} parent=1 // loop_footer_branch
      %20 = sbr.rel target = $region3
    $region8: #{tpu_custom_call.1} parent=1 // loop_exit
      _
    %1147 = vsyncpa [#allocation4], 1
    %s1148 = scalar_lea.sflag [#allocation4], 1
    %1149 = vsyncpa %s1148, 1
    %1150 = vsyncpa [#allocation7], 1
    %1151 = vsyncpa [#allocation5], 1
    %s1152 = scalar_lea.sflag [#allocation5], 1
    %1153 = vsyncpa %s1152, 1

</llo_original>
